<compile_context>
chip_gen: v6e
topology: v6e:2x2x1
jax: 0.10.0
libtpu: 0.0.40
codegen_flags: <defaults>
</compile_context>

<pallas_src>
import jax
import jax.numpy as jnp
from jax.experimental import pallas as pl
from jax.experimental.pallas import tpu as pltpu


def _round_up(x, m):
    return ((x + m - 1) // m) * m


def _critic_kernel(x_ref, w1_ref, b1_ref, w2_ref, b2_ref, w3_ref, b3_ref, out_ref):
    # fc1: h1^T = W1 @ x^T + b1   ([128, d_in] @ [d_in, TILE_B] -> [128, TILE_B], f32 acc)
    h1 = jnp.dot(w1_ref[...], x_ref[...],
                 preferred_element_type=jnp.float32) + b1_ref[...]
    h1 = jnp.maximum(h1, 0.0).astype(jnp.bfloat16)

    # fc2: h2^T = W2 @ h1^T + b2  ([128, 128] @ [128, TILE_B] -> [128, TILE_B], f32 acc)
    h2 = jnp.dot(w2_ref[...], h1,
                 preferred_element_type=jnp.float32) + b2_ref[...]
    h2 = jnp.maximum(h2, 0.0)            # stays f32: fc3 runs on VPU/XLU, not the MXU

    # fc3 on VPU + XLU: out^T = sum_h(w3[h] * h2[h, :]) + b3 -> [1, TILE_B] lane-dense
    out_ref[...] = jnp.sum(w3_ref[...] * h2, axis=0, keepdims=True) + b3_ref[0, 0]


def critic_forward(demand, response, params, *, tile_b_max=8192):
    """demand: [B, Dd], response: [B, Dr]  ->  [B, 1] float32."""
    w1, b1, w2, b2, w3, b3 = params        # PyTorch layout: W is [out, in], b is [out, 1]
    B = demand.shape[0]
    hidden = w1.shape[0]
    d_in = w1.shape[1]

    # --- grid / tile selection: pick the step count first, then derive the tile ----
    b_128 = _round_up(max(B, 1), 128)
    n_steps = max(2, pl.cdiv(b_128, tile_b_max))   # >= 2 so v7x can use both TCs
    if n_steps % 2:
        n_steps += 1                               # even step count balances the cores
    tile_b = _round_up(pl.cdiv(b_128, n_steps), 128)
    b_pad = n_steps * tile_b

    # --- lane-dense transposed input (batch on the lane axis), minimal relayout ----
    # Transpose + bf16 cast fuse per input; pad folds into the same fusion.
    x_t = jnp.concatenate([demand.T, response.T], axis=0).astype(jnp.bfloat16)  # [d_in, B]
    if b_pad != B:
        x_t = jnp.pad(x_t, ((0, 0), (0, b_pad - B)))

    # bf16 weights for the MXU layers (f32 accumulation in-kernel); fc3 stays f32.
    w1b = w1.astype(jnp.bfloat16)
    w2b = w2.astype(jnp.bfloat16)
    w3_col = w3.reshape(hidden, 1).astype(jnp.float32)   # [hidden, 1] column for the VPU

    const = lambda i: (0, 0)   # weights/biases: same block every step -> VMEM resident

    weight_bytes = (hidden * d_in + hidden * hidden) * 2 + 2 * hidden * 4 + hidden * 4 + 4
    cost = pl.CostEstimate(
        flops=2 * b_pad * (d_in * hidden + hidden * hidden + hidden),
        transcendentals=0,
        bytes_accessed=b_pad * (d_in * 2 + 4) + weight_bytes,
    )

    vmem_est = (4 * hidden * tile_b * 4        # f32 intermediates (h1, h2, fc3 product)
                + 2 * d_in * tile_b * 2 * 2    # double-buffered bf16 x tiles
                + 2 * tile_b * 4               # double-buffered f32 out tiles
                + 2 * weight_bytes
                + (2 << 20))                   # headroom
    vmem_limit = int(max(32 << 20, min(2 * vmem_est, 64 << 20)))

    out_t = pl.pallas_call(
        _critic_kernel,
        out_shape=jax.ShapeDtypeStruct((1, b_pad), jnp.float32),
        grid=(n_steps,),
        in_specs=[
            pl.BlockSpec((d_in, tile_b), lambda i: (0, i)),    # x^T, streamed per tile
            pl.BlockSpec((hidden, d_in), const),               # W1
            pl.BlockSpec((hidden, 1), const),                  # b1
            pl.BlockSpec((hidden, hidden), const),             # W2
            pl.BlockSpec((hidden, 1), const),                  # b2
            pl.BlockSpec((hidden, 1), const),                  # W3 column (f32, VPU fc3)
            pl.BlockSpec(memory_space=pltpu.SMEM),             # b3 scalar in SMEM
        ],
        out_specs=pl.BlockSpec((1, tile_b), lambda i: (0, i)),  # lane-dense [1, TILE_B]
        compiler_params=pltpu.CompilerParams(
            dimension_semantics=("parallel",),
            vmem_limit_bytes=vmem_limit,
        ),
        cost_estimate=cost,
    )(x_t, w1b, b1, w2b, b2, w3_col, b3)

    return out_t[0, :B].reshape(B, 1)   # back to the module's [B, 1] API (no transpose copy)


def init_params(key, demand_dim, response_dim, hidden=128):
    """Deterministic init mimicking nn.Linear's U(-1/sqrt(fan_in), 1/sqrt(fan_in)).

    Weights are kept in PyTorch's native [out, in] layout (exactly what the transposed
    kernel consumes); biases are stored as [out, 1] columns.
    """
    in1 = demand_dim + response_dim
    ks = jax.random.split(key, 6)

    def unif(k, shape, fan_in):
        bound = 1.0 / jnp.sqrt(jnp.float32(fan_in))
        return jax.random.uniform(k, shape, jnp.float32, -bound, bound)

    w1 = unif(ks[0], (hidden, in1), in1)
    b1 = unif(ks[1], (hidden, 1), in1)
    w2 = unif(ks[2], (hidden, hidden), hidden)
    b2 = unif(ks[3], (hidden, 1), hidden)
    w3 = unif(ks[4], (1, hidden), hidden)
    b3 = unif(ks[5], (1, 1), hidden)
    return (w1, b1, w2, b2, w3, b3)


def critic_reference(demand, response, params):
    """Plain-JAX f32 reference of the PyTorch forward."""
    w1, b1, w2, b2, w3, b3 = params
    x = jnp.concatenate([demand, response], axis=1)
    h1 = jax.nn.relu(x @ w1.T + b1[:, 0])
    h2 = jax.nn.relu(h1 @ w2.T + b2[:, 0])
    return h2 @ w3.T + b3[:, 0]


if __name__ == "__main__":
    key = jax.random.PRNGKey(0)
    batch, demand_dim, response_dim = 8, 16, 16

    kp, kd, kr = jax.random.split(key, 3)
    params = init_params(kp, demand_dim, response_dim)
    demand = jax.random.normal(kd, (batch, demand_dim), jnp.float32)
    response = jax.random.normal(kr, (batch, response_dim), jnp.float32)

    out = critic_forward(demand, response, params)
    out = jax.block_until_ready(out)

    ref = critic_reference(demand, response, params)
    assert out.shape == (batch, 1)
    # bf16 matmul inputs with f32 accumulation -> loosened tolerance vs f32 reference.
    assert jnp.allclose(out, ref, atol=3e-2, rtol=3e-2), (out, ref)

    print("KERNEL_OK")
</pallas_src>

<mosaic_0001>
module attributes {stable_mosaic.version = 11 : i64} {
  func.func @_critic_kernel(%arg0: i32, %arg1: memref<32x128xbf16, #tpu.memory_space<vmem>>, %arg2: memref<128x32xbf16, #tpu.memory_space<vmem>>, %arg3: memref<128x1xf32, #tpu.memory_space<vmem>>, %arg4: memref<128x128xbf16, #tpu.memory_space<vmem>>, %arg5: memref<128x1xf32, #tpu.memory_space<vmem>>, %arg6: memref<128x1xf32, #tpu.memory_space<vmem>>, %arg7: memref<1x1xf32, #tpu.memory_space<smem>>, %arg8: memref<1x128xf32, #tpu.memory_space<vmem>>) attributes {dimension_semantics = [#tpu.dimension_semantics<parallel>], iteration_bounds = array<i64: 2>, scalar_prefetch = 0 : i64, scratch_operands = 0 : i64, tpu.core_type = #tpu.core_type<tc>, window_params = [{transform_indices = @transform_0, window_bounds = array<i64: 32, 128>}, {pipeline_mode = #tpu.pipeline_mode<synchronous>, transform_indices = @transform_1, window_bounds = array<i64: 128, 32>}, {pipeline_mode = #tpu.pipeline_mode<synchronous>, transform_indices = @transform_2, window_bounds = array<i64: 128, 1>}, {pipeline_mode = #tpu.pipeline_mode<synchronous>, transform_indices = @transform_3, window_bounds = array<i64: 128, 128>}, {pipeline_mode = #tpu.pipeline_mode<synchronous>, transform_indices = @transform_4, window_bounds = array<i64: 128, 1>}, {pipeline_mode = #tpu.pipeline_mode<synchronous>, transform_indices = @transform_5, window_bounds = array<i64: 128, 1>}, {transform_indices = @transform_6, window_bounds = array<i64: 1, 1>}, {transform_indices = @transform_7, window_bounds = array<i64: 1, 128>}]} {
    %c0 = arith.constant 0 : index
    %c0_0 = arith.constant 0 : index
    %0 = vector.load %arg2[%c0, %c0_0] : memref<128x32xbf16, #tpu.memory_space<vmem>>, vector<128x32xbf16>
    %c0_1 = arith.constant 0 : index
    %c0_2 = arith.constant 0 : index
    %1 = vector.load %arg1[%c0_1, %c0_2] : memref<32x128xbf16, #tpu.memory_space<vmem>>, vector<32x128xbf16>
    %cst = arith.constant dense<0.000000e+00> : vector<128x128xf32>
    %2 = tpu.matmul %0, %1, %cst {dimension_numbers = #tpu.dot_dimension_numbers<[1], [0], [0], [1], [0, 0, 1, 1], [], []>} : vector<128x32xbf16>, vector<32x128xbf16>, vector<128x128xf32> -> vector<128x128xf32>
    %c0_3 = arith.constant 0 : index
    %c0_4 = arith.constant 0 : index
    %3 = vector.load %arg3[%c0_3, %c0_4] : memref<128x1xf32, #tpu.memory_space<vmem>>, vector<128x1xf32>
    %4 = vector.broadcast %3 : vector<128x1xf32> to vector<128x128xf32>
    %5 = arith.addf %2, %4 : vector<128x128xf32>
    %cst_5 = arith.constant 0.000000e+00 : f32
    %6 = vector.broadcast %cst_5 : f32 to vector<128x128xf32>
    %7 = arith.maximumf %5, %6 : vector<128x128xf32>
    %8 = arith.truncf %7 : vector<128x128xf32> to vector<128x128xbf16>
    %c0_6 = arith.constant 0 : index
    %c0_7 = arith.constant 0 : index
    %9 = vector.load %arg4[%c0_6, %c0_7] : memref<128x128xbf16, #tpu.memory_space<vmem>>, vector<128x128xbf16>
    %cst_8 = arith.constant dense<0.000000e+00> : vector<128x128xf32>
    %10 = tpu.matmul %9, %8, %cst_8 {dimension_numbers = #tpu.dot_dimension_numbers<[1], [0], [0], [1], [0, 0, 1, 1], [], []>} : vector<128x128xbf16>, vector<128x128xbf16>, vector<128x128xf32> -> vector<128x128xf32>
    %c0_9 = arith.constant 0 : index
    %c0_10 = arith.constant 0 : index
    %11 = vector.load %arg5[%c0_9, %c0_10] : memref<128x1xf32, #tpu.memory_space<vmem>>, vector<128x1xf32>
    %12 = vector.broadcast %11 : vector<128x1xf32> to vector<128x128xf32>
    %13 = arith.addf %10, %12 : vector<128x128xf32>
    %cst_11 = arith.constant 0.000000e+00 : f32
    %14 = vector.broadcast %cst_11 : f32 to vector<128x128xf32>
    %15 = arith.maximumf %13, %14 : vector<128x128xf32>
    %c0_12 = arith.constant 0 : index
    %c0_13 = arith.constant 0 : index
    %16 = vector.load %arg6[%c0_12, %c0_13] : memref<128x1xf32, #tpu.memory_space<vmem>>, vector<128x1xf32>
    %17 = vector.broadcast %16 : vector<128x1xf32> to vector<128x128xf32>
    %18 = arith.mulf %17, %15 : vector<128x128xf32>
    %cst_14 = arith.constant dense<0.000000e+00> : vector<128xf32>
    %19 = vector.multi_reduction <add>, %18, %cst_14 [0] : vector<128x128xf32> to vector<128xf32>
    %20 = vector.shape_cast %19 : vector<128xf32> to vector<1x128xf32>
    %c0_15 = arith.constant 0 : index
    %c0_16 = arith.constant 0 : index
    %21 = memref.load %arg7[%c0_15, %c0_16] : memref<1x1xf32, #tpu.memory_space<smem>>
    %22 = vector.broadcast %21 : f32 to vector<1x128xf32>
    %23 = arith.addf %20, %22 : vector<1x128xf32>
    %c0_17 = arith.constant 0 : index
    %c0_18 = arith.constant 0 : index
    %24 = vector.load %arg8[%c0_17, %c0_18] : memref<1x128xf32, #tpu.memory_space<vmem>>, vector<1x128xf32>
    tpu.vector_store %arg8[%c0_17, %c0_18], %23 {strides = array<i32>} : memref<1x128xf32, #tpu.memory_space<vmem>>, vector<1x128xf32>,
    return
  }
  func.func @transform_0(%arg0: i32) -> (i32, i32) {
    %c0_i32 = arith.constant 0 : i32
    %c0_i32_0 = arith.constant 0 : i32
    return %c0_i32, %arg0 : i32, i32
  }
  func.func @transform_1(%arg0: i32) -> (i32, i32) {
    %c0_i32 = arith.constant 0 : i32
    %c0_i32_0 = arith.constant 0 : i32
    %c0_i32_1 = arith.constant 0 : i32
    return %c0_i32, %c0_i32_0 : i32, i32
  }
  func.func @transform_2(%arg0: i32) -> (i32, i32) {
    %c0_i32 = arith.constant 0 : i32
    %c0_i32_0 = arith.constant 0 : i32
    %c0_i32_1 = arith.constant 0 : i32
    return %c0_i32, %c0_i32_0 : i32, i32
  }
  func.func @transform_3(%arg0: i32) -> (i32, i32) {
    %c0_i32 = arith.constant 0 : i32
    %c0_i32_0 = arith.constant 0 : i32
    %c0_i32_1 = arith.constant 0 : i32
    return %c0_i32, %c0_i32_0 : i32, i32
  }
  func.func @transform_4(%arg0: i32) -> (i32, i32) {
    %c0_i32 = arith.constant 0 : i32
    %c0_i32_0 = arith.constant 0 : i32
    %c0_i32_1 = arith.constant 0 : i32
    return %c0_i32, %c0_i32_0 : i32, i32
  }
  func.func @transform_5(%arg0: i32) -> (i32, i32) {
    %c0_i32 = arith.constant 0 : i32
    %c0_i32_0 = arith.constant 0 : i32
    %c0_i32_1 = arith.constant 0 : i32
    return %c0_i32, %c0_i32_0 : i32, i32
  }
  func.func @transform_6(%arg0: i32) -> (i32, i32) {
    %c0_i32 = arith.constant 0 : i32
    %c0_i32_0 = arith.constant 0 : i32
    %c0_i32_1 = arith.constant 0 : i32
    return %c0_i32, %c0_i32_0 : i32, i32
  }
  func.func @transform_7(%arg0: i32) -> (i32, i32) {
    %c0_i32 = arith.constant 0 : i32
    %c0_i32_0 = arith.constant 0 : i32
    return %c0_i32, %arg0 : i32, i32
  }
}

</mosaic_0001>

<llo_original>
// kernel: tpu_custom_call.1
$region0: #{tpu_custom_call.1}
  #allocation0 [shape = 'u32[]', space=smem, size = 0x4, offset = 0x4, fixed_abs, tag = 'smem constant byte address 0x4 - core index']
  #allocation1 [shape = 'u32[144,128]{1,0:T(1,128)}', space=vmem, size = 0x12000, scoped, tag = 'internal scratch']
  #allocation2 [shape = 'f32[1,1]{1,0:T(1,128)S(6)}', space=smem, size = 0x200, scoped, tag = 'scoped memory for tpu_custom_call.1']
  %s0 = inlined_call_operand.vmem [shape: bf16[32,256], index: 0, kind: input, shape index: {}]
  %s1 = inlined_call_operand.vmem [shape: bf16[128,32], index: 1, kind: input, shape index: {}]
  %s2 = inlined_call_operand.vmem [shape: f32[128,1], index: 2, kind: input, shape index: {}]
  %s3 = inlined_call_operand.vmem [shape: bf16[128,128], index: 3, kind: input, shape index: {}]
  %s4 = inlined_call_operand.vmem [shape: f32[128,1], index: 4, kind: input, shape index: {}]
  %s5 = inlined_call_operand.vmem [shape: f32[128,1], index: 5, kind: input, shape index: {}]
  %s6 = inlined_call_operand.<no memory space> [shape: f32[1,1], index: 6, kind: input, shape index: {}]
  %s7 = inlined_call_operand.hbm [shape: f32[1,256], index: 7, kind: output, shape index: {}]
  %s8 = sld [smem:[#allocation0]]
  $region102: #{tpu_custom_call.1} parent=0
    _
  %s10 = ssub.s32 1, %s8
  %s11 = scalar_select 0, %s10, %s8
  %12 = sst [smem:[#allocation2]] %s6
  $region1: #{tpu_custom_call.1} parent=0
    #allocation3 [shape = 'u8[16384]{0}', space=vmem, size = 0x4000, scoped, tag = 'input window, operand 0']
    #allocation4 [shape = 'u8[1024]{0}', space=vmem, size = 0x400, scoped, tag = 'output window, operand 0']
    #allocation5 [shape = 's32[2]{0}', space=sflag, size = 0x8, scoped, tag = 'scoped memory for tpu_custom_call.1']
    %13 = vsyncpa [#allocation5], 0
    %s14 = scalar_lea.sflag [#allocation5], 1
    %15 = vsyncpa %s14, 0
    loop: start=0, step=1, limit=4
    $region2: #{tpu_custom_call.1} parent=1 // loop_pre_header
      _
    $region3: #{tpu_custom_call.1} parent=1 // loop_header
      %s17 = sphi 0, %s21
      %p18 = scmp.ge.s32.totalorder %s17, 4
      %s27 = sphi 0, %s29
      %s30 = sphi 0, %s27
      %s31 = sphi 0, %s30
      %s47 = sphi 0, %s31
      %s51 = sphi 0, %s51
      %s53 = sphi 0, %s51
      %s54 = sphi 0, %s53
      %s68 = sphi 0, %s54
      %s72 = sphi 0, %s72
      %s74 = sphi 0, %s72
      %s75 = sphi 0, %s74
      %s89 = sphi 0, %s75
      %s93 = sphi 0, %s93
      %s95 = sphi 0, %s93
      %s96 = sphi 0, %s95
      %s110 = sphi 0, %s96
      %s114 = sphi 0, %s114
      %s116 = sphi 0, %s114
      %s117 = sphi 0, %s116
      %s131 = sphi 0, %s117
      %s135 = sphi 0, %s135
      %s137 = sphi 0, %s135
      %s138 = sphi 0, %s137
      %s152 = sphi 0, %s138
      %s156 = sphi 0, %s156
      %s158 = sphi 0, %s156
      %s159 = sphi 0, %s158
      %s173 = sphi 0, %s159
      %s179 = sphi 0, %s181
      %s182 = sphi 0, %s179
      %s183 = sphi 0, %s182
      %s199 = sphi 0, %s183
    $region4: #{tpu_custom_call.1} parent=1 // loop_header_branch
      %20 = sbr.rel (%p18) target = $region8
    $region5: #{tpu_custom_call.1} parent=1 // loop_body
      %s22 = ssub.s32 %s17, 1
      %s23 = ssub.s32 %s17, 2
      %s24 = sadd.s32 %s17, 1
      %s25 = ssub.s32 %s17, %s24
      %p26 = scmp.eq.s32.totalorder %s25, 0
      %s28 = sadd.s32 %s27, 1
      %s29 = scalar_select %p26, %s27, %s28
      %p32 = pneg %p26
      %p33 = scmp.eq.s32.totalorder %s17, 1
      %p34 = por %p32, %p33
      %p35 = scmp.ne.s32.totalorder %s27, %s30
      %p36 = scmp.eq.s32.totalorder %s17, 0
      %p37 = por %p35, %p36
      %p38 = scmp.ne.s32.totalorder %s27, %s30
      %p39 = scmp.eq.s32.totalorder %s22, 1
      %p40 = por %p38, %p39
      %p41 = scmp.ne.s32.totalorder %s30, %s31
      %p42 = scmp.eq.s32.totalorder %s22, 0
      %p43 = por %p41, %p42
      %p44 = scmp.ne.s32.totalorder %s30, %s31
      %p45 = scmp.eq.s32.totalorder %s23, 1
      %p46 = por %p44, %p45
      %p48 = scmp.ne.s32.totalorder %s31, %s47
      %p49 = scmp.eq.s32.totalorder %s23, 0
      %p50 = por %p48, %p49
      %s52 = sadd.s32 %s51, 1
      %p55 = scmp.eq.s32.totalorder %s17, 1
      %p56 = scmp.ne.s32.totalorder %s51, %s53
      %p57 = scmp.eq.s32.totalorder %s17, 0
      %p58 = por %p56, %p57
      %p59 = scmp.ne.s32.totalorder %s51, %s53
      %p60 = scmp.eq.s32.totalorder %s22, 1
      %p61 = por %p59, %p60
      %p62 = scmp.ne.s32.totalorder %s53, %s54
      %p63 = scmp.eq.s32.totalorder %s22, 0
      %p64 = por %p62, %p63
      %p65 = scmp.ne.s32.totalorder %s53, %s54
      %p66 = scmp.eq.s32.totalorder %s23, 1
      %p67 = por %p65, %p66
      %p69 = scmp.ne.s32.totalorder %s54, %s68
      %p70 = scmp.eq.s32.totalorder %s23, 0
      %p71 = por %p69, %p70
      %s73 = sadd.s32 %s72, 1
      %p76 = scmp.eq.s32.totalorder %s17, 1
      %p77 = scmp.ne.s32.totalorder %s72, %s74
      %p78 = scmp.eq.s32.totalorder %s17, 0
      %p79 = por %p77, %p78
      %p80 = scmp.ne.s32.totalorder %s72, %s74
      %p81 = scmp.eq.s32.totalorder %s22, 1
      %p82 = por %p80, %p81
      %p83 = scmp.ne.s32.totalorder %s74, %s75
      %p84 = scmp.eq.s32.totalorder %s22, 0
      %p85 = por %p83, %p84
      %p86 = scmp.ne.s32.totalorder %s74, %s75
      %p87 = scmp.eq.s32.totalorder %s23, 1
      %p88 = por %p86, %p87
      %p90 = scmp.ne.s32.totalorder %s75, %s89
      %p91 = scmp.eq.s32.totalorder %s23, 0
      %p92 = por %p90, %p91
      %s94 = sadd.s32 %s93, 1
      %p97 = scmp.eq.s32.totalorder %s17, 1
      %p98 = scmp.ne.s32.totalorder %s93, %s95
      %p99 = scmp.eq.s32.totalorder %s17, 0
      %p100 = por %p98, %p99
      %p101 = scmp.ne.s32.totalorder %s93, %s95
      %p102 = scmp.eq.s32.totalorder %s22, 1
      %p103 = por %p101, %p102
      %p104 = scmp.ne.s32.totalorder %s95, %s96
      %p105 = scmp.eq.s32.totalorder %s22, 0
      %p106 = por %p104, %p105
      %p107 = scmp.ne.s32.totalorder %s95, %s96
      %p108 = scmp.eq.s32.totalorder %s23, 1
      %p109 = por %p107, %p108
      %p111 = scmp.ne.s32.totalorder %s96, %s110
      %p112 = scmp.eq.s32.totalorder %s23, 0
      %p113 = por %p111, %p112
      %s115 = sadd.s32 %s114, 1
      %p118 = scmp.eq.s32.totalorder %s17, 1
      %p119 = scmp.ne.s32.totalorder %s114, %s116
      %p120 = scmp.eq.s32.totalorder %s17, 0
      %p121 = por %p119, %p120
      %p122 = scmp.ne.s32.totalorder %s114, %s116
      %p123 = scmp.eq.s32.totalorder %s22, 1
      %p124 = por %p122, %p123
      %p125 = scmp.ne.s32.totalorder %s116, %s117
      %p126 = scmp.eq.s32.totalorder %s22, 0
      %p127 = por %p125, %p126
      %p128 = scmp.ne.s32.totalorder %s116, %s117
      %p129 = scmp.eq.s32.totalorder %s23, 1
      %p130 = por %p128, %p129
      %p132 = scmp.ne.s32.totalorder %s117, %s131
      %p133 = scmp.eq.s32.totalorder %s23, 0
      %p134 = por %p132, %p133
      %s136 = sadd.s32 %s135, 1
      %p139 = scmp.eq.s32.totalorder %s17, 1
      %p140 = scmp.ne.s32.totalorder %s135, %s137
      %p141 = scmp.eq.s32.totalorder %s17, 0
      %p142 = por %p140, %p141
      %p143 = scmp.ne.s32.totalorder %s135, %s137
      %p144 = scmp.eq.s32.totalorder %s22, 1
      %p145 = por %p143, %p144
      %p146 = scmp.ne.s32.totalorder %s137, %s138
      %p147 = scmp.eq.s32.totalorder %s22, 0
      %p148 = por %p146, %p147
      %p149 = scmp.ne.s32.totalorder %s137, %s138
      %p150 = scmp.eq.s32.totalorder %s23, 1
      %p151 = por %p149, %p150
      %p153 = scmp.ne.s32.totalorder %s138, %s152
      %p154 = scmp.eq.s32.totalorder %s23, 0
      %p155 = por %p153, %p154
      %s157 = sadd.s32 %s156, 1
      %p160 = scmp.eq.s32.totalorder %s17, 1
      %p161 = scmp.ne.s32.totalorder %s156, %s158
      %p162 = scmp.eq.s32.totalorder %s17, 0
      %p163 = por %p161, %p162
      %p164 = scmp.ne.s32.totalorder %s156, %s158
      %p165 = scmp.eq.s32.totalorder %s22, 1
      %p166 = por %p164, %p165
      %p167 = scmp.ne.s32.totalorder %s158, %s159
      %p168 = scmp.eq.s32.totalorder %s22, 0
      %p169 = por %p167, %p168
      %p170 = scmp.ne.s32.totalorder %s158, %s159
      %p171 = scmp.eq.s32.totalorder %s23, 1
      %p172 = por %p170, %p171
      %p174 = scmp.ne.s32.totalorder %s159, %s173
      %p175 = scmp.eq.s32.totalorder %s23, 0
      %p176 = por %p174, %p175
      %s177 = ssub.s32 %s17, %s24
      %p178 = scmp.eq.s32.totalorder %s177, 0
      %s180 = sadd.s32 %s179, 1
      %s181 = scalar_select %p178, %s179, %s180
      %p184 = pneg %p178
      %p185 = scmp.eq.s32.totalorder %s17, 1
      %p186 = por %p184, %p185
      %p187 = scmp.ne.s32.totalorder %s179, %s182
      %p188 = scmp.eq.s32.totalorder %s17, 0
      %p189 = por %p187, %p188
      %p190 = scmp.ne.s32.totalorder %s179, %s182
      %p191 = scmp.eq.s32.totalorder %s22, 1
      %p192 = por %p190, %p191
      %p193 = scmp.ne.s32.totalorder %s182, %s183
      %p194 = scmp.eq.s32.totalorder %s22, 0
      %p195 = por %p193, %p194
      %p196 = scmp.ne.s32.totalorder %s182, %s183
      %p197 = scmp.eq.s32.totalorder %s23, 1
      %p198 = por %p196, %p197
      %p200 = scmp.ne.s32.totalorder %s183, %s199
      %p201 = scmp.eq.s32.totalorder %s23, 0
      %p202 = por %p200, %p201
      %p203 = scmp.le.s32.totalorder 1, %s17
      %p204 = scmp.lt.s32.totalorder %s17, 3
      %p205 = pnand %p203, %p204
      %p206 = pneg %p205
      // Predicated region
      $region9: #{tpu_custom_call.1} parent=5 // pred_check
        _
      $region10: #{tpu_custom_call.1} parent=5 // pred_check_branch
        %208 = sbr.rel (%p205) target = $region12
      $region11: #{tpu_custom_call.1} parent=5 // pred_region
        %s209 = ssub.s32 %s17, 1
        // Predicated region
        $region13: #{tpu_custom_call.1} parent=11 // pred_check
          %p210 = pneg %p64
        $region14: #{tpu_custom_call.1} parent=11 // pred_check_branch
          %212 = sbr.rel (%p210) target = $region16
        $region15: #{tpu_custom_call.1} parent=11 // pred_region
          _
        $region16: #{tpu_custom_call.1} parent=11 // pred_fallthru
          _
        // Predicated region
        $region17: #{tpu_custom_call.1} parent=11 // pred_check
          %p213 = pneg %p85
        $region18: #{tpu_custom_call.1} parent=11 // pred_check_branch
          %215 = sbr.rel (%p213) target = $region20
        $region19: #{tpu_custom_call.1} parent=11 // pred_region
          _
        $region20: #{tpu_custom_call.1} parent=11 // pred_fallthru
          _
        // Predicated region
        $region21: #{tpu_custom_call.1} parent=11 // pred_check
          %p216 = pneg %p106
        $region22: #{tpu_custom_call.1} parent=11 // pred_check_branch
          %218 = sbr.rel (%p216) target = $region24
        $region23: #{tpu_custom_call.1} parent=11 // pred_region
          _
        $region24: #{tpu_custom_call.1} parent=11 // pred_fallthru
          _
        // Predicated region
        $region25: #{tpu_custom_call.1} parent=11 // pred_check
          %p219 = pneg %p127
        $region26: #{tpu_custom_call.1} parent=11 // pred_check_branch
          %221 = sbr.rel (%p219) target = $region28
        $region27: #{tpu_custom_call.1} parent=11 // pred_region
          _
        $region28: #{tpu_custom_call.1} parent=11 // pred_fallthru
          _
        // Predicated region
        $region29: #{tpu_custom_call.1} parent=11 // pred_check
          %p222 = pneg %p148
        $region30: #{tpu_custom_call.1} parent=11 // pred_check_branch
          %224 = sbr.rel (%p222) target = $region32
        $region31: #{tpu_custom_call.1} parent=11 // pred_region
          _
        $region32: #{tpu_custom_call.1} parent=11 // pred_fallthru
          _
        // Predicated region
        $region33: #{tpu_custom_call.1} parent=11 // pred_check
          %p225 = pneg %p169
        $region34: #{tpu_custom_call.1} parent=11 // pred_check_branch
          %227 = sbr.rel (%p225) target = $region36
        $region35: #{tpu_custom_call.1} parent=11 // pred_region
          _
        $region36: #{tpu_custom_call.1} parent=11 // pred_fallthru
          _
      $region12: #{tpu_custom_call.1} parent=5 // pred_fallthru
        _
      %p228 = scmp.lt.s32.totalorder %s17, 2
      // Predicated region
      $region37: #{tpu_custom_call.1} parent=5 // pred_check
        %p229 = pneg %p228
      $region38: #{tpu_custom_call.1} parent=5 // pred_check_branch
        %231 = sbr.rel (%p229) target = $region40
      $region39: #{tpu_custom_call.1} parent=5 // pred_region
        // Predicated region
        $region41: #{tpu_custom_call.1} parent=39 // pred_check
          %p232 = pneg %p37
        $region42: #{tpu_custom_call.1} parent=39 // pred_check_branch
          %234 = sbr.rel (%p232) target = $region44
        $region43: #{tpu_custom_call.1} parent=39 // pred_region
          %s235 = sand.u32 %s27, 1
          %s236 = sand.u32 %s27, 1
          %s237 = smul.addr %s236, 16
          %s238 = scalar_lea.vmem [#allocation3], %s237
          %s239 = smul.addr %s17, 4
          %s240 = scalar_lea.vmem %s0, %s239
          // Predicated region
          $region45: #{tpu_custom_call.1} parent=43 // pred_check
            _
          $region46: #{tpu_custom_call.1} parent=43 // pred_check_branch
            %242 = sbr.rel (0) target = $region48
          $region47: #{tpu_custom_call.1} parent=43 // pred_region
            // Predicated region
            $region49: #{tpu_custom_call.1} parent=47 // pred_check
              _
            $region50: #{tpu_custom_call.1} parent=47 // pred_check_branch
              %244 = sbr.rel target = $region52
            $region51: #{tpu_custom_call.1} parent=47 // pred_region
              // Predicated region
              $region64: #{tpu_custom_call.1} parent=51 // pred_check
                _
              $region65: #{tpu_custom_call.1} parent=51 // pred_check_branch
                %266 = sbr.rel (0) target = $region67
              $region66: #{tpu_custom_call.1} parent=51 // pred_region
                loop: start=0, step=1, limit=1
                $region68: #{tpu_custom_call.1} parent=66 // loop_pre_header
                  _
                $region69: #{tpu_custom_call.1} parent=66 // loop_header
                  %s268 = sphi 0, %s272
                  %p269 = scmp.ge.s32.totalorder %s268, 1
                  %s273 = sphi %s240, %s240
                  %s274 = sphi %s238, %s238
                $region70: #{tpu_custom_call.1} parent=66 // loop_header_branch
                  %271 = sbr.rel (%p269) target = $region74
                $region71: #{tpu_custom_call.1} parent=66 // loop_body
                  _
                $region72: #{tpu_custom_call.1} parent=66 // loop_footer
                  %s272 = sadd.s32 1, %s268
                $region73: #{tpu_custom_call.1} parent=66 // loop_footer_branch
                  %267 = sbr.rel target = $region69
                $region74: #{tpu_custom_call.1} parent=66 // loop_exit
                  _
                %s276 = ssub.s32 16, 1
                loop: start=0, step=1, limit=1
                $region75: #{tpu_custom_call.1} parent=66 // loop_pre_header
                  _
                $region76: #{tpu_custom_call.1} parent=66 // loop_header
                  %s278 = sphi 0, %s282
                  %p279 = scmp.ge.s32.totalorder %s278, 1
                  %s283 = sphi %s240, %s240
                  %s284 = sphi %s238, %s238
                $region77: #{tpu_custom_call.1} parent=66 // loop_header_branch
                  %281 = sbr.rel (%p279) target = $region81
                $region78: #{tpu_custom_call.1} parent=66 // loop_body
                  %v285 = vld [vmem:[%s283] sm:%s276]
                  %286 = vst [vmem:[%s284] sm:%s276] %v285
                  %v287 = vld [vmem:[%s283 + $0x8] sm:%s276]
                  %288 = vst [vmem:[%s284 + $0x4] sm:%s276] %v287
                  %v289 = vld [vmem:[%s283 + $0x10] sm:%s276]
                  %290 = vst [vmem:[%s284 + $0x8] sm:%s276] %v289
                  %v291 = vld [vmem:[%s283 + $0x18] sm:%s276]
                  %292 = vst [vmem:[%s284 + $0xc] sm:%s276] %v291
                $region79: #{tpu_custom_call.1} parent=66 // loop_footer
                  %s282 = sadd.s32 1, %s278
                $region80: #{tpu_custom_call.1} parent=66 // loop_footer_branch
                  %277 = sbr.rel target = $region76
                $region81: #{tpu_custom_call.1} parent=66 // loop_exit
                  _
              $region67: #{tpu_custom_call.1} parent=51 // pred_fallthru
                _
            $region52: #{tpu_custom_call.1} parent=47 // pred_fallthru
              _
            // Predicated region
            $region53: #{tpu_custom_call.1} parent=47 // pred_check
              _
            $region54: #{tpu_custom_call.1} parent=47 // pred_check_branch
              %246 = sbr.rel (0) target = $region56
            $region55: #{tpu_custom_call.1} parent=47 // pred_region
              %s248 = ssub.s32 16, 1
              loop: start=0, step=1, limit=1
              $region57: #{tpu_custom_call.1} parent=55 // loop_pre_header
                _
              $region58: #{tpu_custom_call.1} parent=55 // loop_header
                %s250 = sphi 0, %s254
                %p251 = scmp.ge.s32.totalorder %s250, 1
                %s255 = sphi %s240, %s240
                %s256 = sphi %s238, %s238
              $region59: #{tpu_custom_call.1} parent=55 // loop_header_branch
                %253 = sbr.rel (%p251) target = $region63
              $region60: #{tpu_custom_call.1} parent=55 // loop_body
                %v257 = vld [vmem:[%s255] sm:%s248]
                %258 = vst [vmem:[%s256] sm:%s248] %v257
                %v259 = vld [vmem:[%s255 + $0x8] sm:%s248]
                %260 = vst [vmem:[%s256 + $0x4] sm:%s248] %v259
                %v261 = vld [vmem:[%s255 + $0x10] sm:%s248]
                %262 = vst [vmem:[%s256 + $0x8] sm:%s248] %v261
                %v263 = vld [vmem:[%s255 + $0x18] sm:%s248]
                %264 = vst [vmem:[%s256 + $0xc] sm:%s248] %v263
              $region61: #{tpu_custom_call.1} parent=55 // loop_footer
                %s254 = sadd.s32 1, %s250
              $region62: #{tpu_custom_call.1} parent=55 // loop_footer_branch
                %249 = sbr.rel target = $region58
              $region63: #{tpu_custom_call.1} parent=55 // loop_exit
                _
            $region56: #{tpu_custom_call.1} parent=47 // pred_fallthru
              _
          $region48: #{tpu_custom_call.1} parent=43 // pred_fallthru
            _
          %293 = vnop
        $region44: #{tpu_custom_call.1} parent=39 // pred_fallthru
          _
      $region40: #{tpu_custom_call.1} parent=5 // pred_fallthru
        _
      %p294 = scmp.le.s32.totalorder 1, %s17
      %p295 = scmp.lt.s32.totalorder %s17, 3
      %p296 = pnand %p294, %p295
      %p297 = pneg %p296
      // Predicated region
      $region82: #{tpu_custom_call.1} parent=5 // pred_check
        _
      $region83: #{tpu_custom_call.1} parent=5 // pred_check_branch
        %299 = sbr.rel (%p296) target = $region85
      $region84: #{tpu_custom_call.1} parent=5 // pred_region
        %s300 = ssub.s32 %s17, 1
        %s301 = sand.u32 %s30, 1
        %s302 = sand.u32 %s30, 1
        %s303 = smul.addr %s302, 16
        %s304 = scalar_lea.vmem [#allocation3], %s303
        // Predicated region
        $region86: #{tpu_custom_call.1} parent=84 // pred_check
          %p305 = pneg %p43
        $region87: #{tpu_custom_call.1} parent=84 // pred_check_branch
          %307 = sbr.rel (%p305) target = $region89
        $region88: #{tpu_custom_call.1} parent=84 // pred_region
          _
        $region89: #{tpu_custom_call.1} parent=84 // pred_fallthru
          _
        %s308 = sand.u32 %s30, 1
        %s309 = sand.u32 %s30, 1
        %s310 = smul.addr %s309, 16
        %s311 = scalar_lea.vmem [#allocation3], %s310
        %p312 = pneg %p43
        %p313 = pneg %p40
        %p314 = pneg %p64
        %p315 = pneg %p61
        %p316 = pneg %p85
        %p317 = pneg %p82
        %p318 = pneg %p106
        %p319 = pneg %p103
        %p320 = pneg %p127
        %p321 = pneg %p124
        %p322 = pneg %p148
        %p323 = pneg %p145
        %p324 = pneg %p169
        %p325 = pneg %p166
        %p326 = pneg %p195
        %p327 = pneg %p192
        %s328 = sand.u32 %s182, 1
        %s329 = scalar_lea.sflag [#allocation5], %s328
        %s330 = sand.u32 %s182, 1
        %s331 = scalar_lea.vmem [#allocation4], %s330
        %v333 = vld [vmem:[%s1] sm:$0xf]
        %v334 = vld [vmem:[%s1 + $0x4] sm:$0xf]
        %v335 = vld [vmem:[%s1 + $0x8] sm:$0xf]
        %v336 = vld [vmem:[%s1 + $0xc] sm:$0xf]
        %v337 = vld [vmem:[%s1 + $0x10] sm:$0xf]
        %v338 = vld [vmem:[%s1 + $0x14] sm:$0xf]
        %v339 = vld [vmem:[%s1 + $0x18] sm:$0xf]
        %v340 = vld [vmem:[%s1 + $0x1c] sm:$0xf]
        %v341 = vld [vmem:[%s1 + $0x20] sm:$0xf]
        %v342 = vld [vmem:[%s1 + $0x24] sm:$0xf]
        %v343 = vld [vmem:[%s1 + $0x28] sm:$0xf]
        %v344 = vld [vmem:[%s1 + $0x2c] sm:$0xf]
        %v345 = vld [vmem:[%s1 + $0x30] sm:$0xf]
        %v346 = vld [vmem:[%s1 + $0x34] sm:$0xf]
        %v347 = vld [vmem:[%s1 + $0x38] sm:$0xf]
        %v348 = vld [vmem:[%s1 + $0x3c] sm:$0xf]
        %v349 = vld [vmem:[%s304] sm:$0xf]
        %v350 = vld [vmem:[%s304 + $0x4] sm:$0xf]
        %v351 = vld [vmem:[%s304 + $0x8] sm:$0xf]
        %v352 = vld [vmem:[%s304 + $0xc] sm:$0xf]
        %v353 = vld [vmem:[%s2] sm:$0xff]
        %v354 = vld [vmem:[%s2 + $0x8] sm:$0xff]
        %v355 = vld [vmem:[%s2 + $0x10] sm:$0xff]
        %v356 = vld [vmem:[%s2 + $0x18] sm:$0xff]
        %v357 = vld [vmem:[%s2 + $0x20] sm:$0xff]
        %v358 = vld [vmem:[%s2 + $0x28] sm:$0xff]
        %v359 = vld [vmem:[%s2 + $0x30] sm:$0xff]
        %v360 = vld [vmem:[%s2 + $0x38] sm:$0xff]
        %v361 = vld [vmem:[%s2 + $0x40] sm:$0xff]
        %v362 = vld [vmem:[%s2 + $0x48] sm:$0xff]
        %v363 = vld [vmem:[%s2 + $0x50] sm:$0xff]
        %v364 = vld [vmem:[%s2 + $0x58] sm:$0xff]
        %v365 = vld [vmem:[%s2 + $0x60] sm:$0xff]
        %v366 = vld [vmem:[%s2 + $0x68] sm:$0xff]
        %v367 = vld [vmem:[%s2 + $0x70] sm:$0xff]
        %v368 = vld [vmem:[%s2 + $0x78] sm:$0xff]
        %370 = vset.pattern.permute.xlu0 0
        %371 = vperm.xlu0 %370, %v353
        %v372 = vpop.permute.xlu0 %371
        %375 = vset.pattern.permute.xlu0 0
        %376 = vperm.xlu0 %375, %v354
        %v377 = vpop.permute.xlu0 %376
        %380 = vset.pattern.permute.xlu0 0
        %381 = vperm.xlu0 %380, %v355
        %v382 = vpop.permute.xlu0 %381
        %385 = vset.pattern.permute.xlu0 0
        %386 = vperm.xlu0 %385, %v356
        %v387 = vpop.permute.xlu0 %386
        %390 = vset.pattern.permute.xlu0 0
        %391 = vperm.xlu0 %390, %v357
        %v392 = vpop.permute.xlu0 %391
        %395 = vset.pattern.permute.xlu0 0
        %396 = vperm.xlu0 %395, %v358
        %v397 = vpop.permute.xlu0 %396
        %400 = vset.pattern.permute.xlu0 0
        %401 = vperm.xlu0 %400, %v359
        %v402 = vpop.permute.xlu0 %401
        %405 = vset.pattern.permute.xlu0 0
        %406 = vperm.xlu0 %405, %v360
        %v407 = vpop.permute.xlu0 %406
        %410 = vset.pattern.permute.xlu0 0
        %411 = vperm.xlu0 %410, %v361
        %v412 = vpop.permute.xlu0 %411
        %415 = vset.pattern.permute.xlu0 0
        %416 = vperm.xlu0 %415, %v362
        %v417 = vpop.permute.xlu0 %416
        %420 = vset.pattern.permute.xlu0 0
        %421 = vperm.xlu0 %420, %v363
        %v422 = vpop.permute.xlu0 %421
        %425 = vset.pattern.permute.xlu0 0
        %426 = vperm.xlu0 %425, %v364
        %v427 = vpop.permute.xlu0 %426
        %430 = vset.pattern.permute.xlu0 0
        %431 = vperm.xlu0 %430, %v365
        %v432 = vpop.permute.xlu0 %431
        %435 = vset.pattern.permute.xlu0 0
        %436 = vperm.xlu0 %435, %v366
        %v437 = vpop.permute.xlu0 %436
        %440 = vset.pattern.permute.xlu0 0
        %441 = vperm.xlu0 %440, %v367
        %v442 = vpop.permute.xlu0 %441
        %445 = vset.pattern.permute.xlu0 0
        %446 = vperm.xlu0 %445, %v368
        %v447 = vpop.permute.xlu0 %446
        %v465 = vunpack.c.l.b16 %v333
        %v466 = vunpack.c.l.b16 %v334
        %v467 = vunpack.c.l.b16 %v335
        %v468 = vunpack.c.l.b16 %v336
        %v469 = vunpack.c.l.b16 %v337
        %v470 = vunpack.c.l.b16 %v338
        %v471 = vunpack.c.l.b16 %v339
        %v472 = vunpack.c.l.b16 %v340
        %v473 = vunpack.c.l.b16 %v341
        %v474 = vunpack.c.l.b16 %v342
        %v475 = vunpack.c.l.b16 %v343
        %v476 = vunpack.c.l.b16 %v344
        %v477 = vunpack.c.l.b16 %v345
        %v478 = vunpack.c.l.b16 %v346
        %v479 = vunpack.c.l.b16 %v347
        %v480 = vunpack.c.l.b16 %v348
        %v481 = vpack.c.b16 %v466, %v465
        %v482 = vpack.c.b16 %v468, %v467
        %v483 = vpack.c.b16 %v470, %v469
        %v484 = vpack.c.b16 %v472, %v471
        %v485 = vpack.c.b16 %v474, %v473
        %v486 = vpack.c.b16 %v476, %v475
        %v487 = vpack.c.b16 %v478, %v477
        %v488 = vpack.c.b16 %v480, %v479
        %v493 = vunpack.c.l.b16 %v349
        %v494 = vunpack.c.l.b16 %v350
        %v495 = vunpack.c.l.b16 %v351
        %v496 = vunpack.c.l.b16 %v352
        %v497 = vpack.c.b16 %v494, %v493
        %v498 = vpack.c.b16 %v496, %v495
        %vm501 = vcmask 261120
        %v503 = vsel %vm501, %v481, 0
        %v506 = vsel %vm501, %v482, 0
        %v509 = vsel %vm501, %v483, 0
        %v512 = vsel %vm501, %v484, 0
        %v515 = vsel %vm501, %v485, 0
        %v518 = vsel %vm501, %v486, 0
        %v521 = vsel %vm501, %v487, 0
        %v524 = vsel %vm501, %v488, 0
        %526 = vmatprep.subr.bf16.mxu0 0
        %527 = vmatpush1.bf16.msra.mxu0 0
        %528 = vmatprep.subr.bf16.mxu0 0
        %529 = vmatpush1.bf16.msra.mxu0 0
        %530 = vmatprep.subr.bf16.mxu0 0
        %531 = vmatpush1.bf16.msra.mxu0 0
        %532 = vmatprep.subr.bf16.mxu0 0
        %533 = vmatpush1.bf16.msra.mxu0 0
        %534 = vmatprep.subr.bf16.mxu0 0
        %535 = vmatpush1.bf16.msra.mxu0 0
        %536 = vmatprep.subr.bf16.mxu0 0
        %537 = vmatpush1.bf16.msra.mxu0 0
        %538 = vmatprep.subr.bf16.mxu0 0
        %539 = vmatpush1.bf16.msra.mxu0 %v498
        %540 = vmatprep.subr.bf16.mxu0 0
        %541 = vmatpush1.bf16.msra.mxu0 %v497
        %542 = vmatprep.subr.bf16.mxu0 0
        %543 = vmatpush2.bf16.msra.mxu0 0
        %544 = vmatprep.subr.bf16.mxu0 0
        %545 = vmatpush2.bf16.msra.mxu0 0
        %546 = vmatprep.subr.bf16.mxu0 0
        %547 = vmatpush2.bf16.msra.mxu0 0
        %548 = vmatprep.subr.bf16.mxu0 0
        %549 = vmatpush2.bf16.msra.mxu0 0
        %550 = vmatprep.subr.bf16.mxu0 0
        %551 = vmatpush2.bf16.msra.mxu0 0
        %552 = vmatprep.subr.bf16.mxu0 0
        %553 = vmatpush2.bf16.msra.mxu0 0
        %554 = vmatprep.subr.bf16.mxu0 0
        %555 = vmatpush2.bf16.msra.mxu0 0
        %556 = vmatprep.subr.bf16.mxu0 0
        %557 = vmatpush2.bf16.msra.mxu0 0
        %558 = vmatprep.mubr.bf16.mxu0 0
        %559 = vmatmul.mubr.bf16.gmra.mxu0 %v503
        %v560 = vpop.f32.mrf.mxu0
        %v561 = vadd.f32 %v372, %v560
        %v562 = vpop.f32.mrf.mxu0
        %v563 = vpop.f32.mrf.mxu0
        %v564 = vadd.f32 %v377, %v563
        %v565 = vpop.f32.mrf.mxu0
        %566 = vmatprep.mubr.bf16.mxu0 0
        %567 = vmatmul.mubr.bf16.gmra.mxu0 %v506
        %v568 = vpop.f32.mrf.mxu0
        %v569 = vadd.f32 %v382, %v568
        %v570 = vpop.f32.mrf.mxu0
        %v571 = vpop.f32.mrf.mxu0
        %v572 = vadd.f32 %v387, %v571
        %v573 = vpop.f32.mrf.mxu0
        %574 = vmatprep.mubr.bf16.mxu0 0
        %575 = vmatmul.mubr.bf16.gmra.mxu0 %v509
        %v576 = vpop.f32.mrf.mxu0
        %v577 = vadd.f32 %v392, %v576
        %v578 = vpop.f32.mrf.mxu0
        %v579 = vpop.f32.mrf.mxu0
        %v580 = vadd.f32 %v397, %v579
        %v581 = vpop.f32.mrf.mxu0
        %582 = vmatprep.mubr.bf16.mxu0 0
        %583 = vmatmul.mubr.bf16.gmra.mxu0 %v512
        %v584 = vpop.f32.mrf.mxu0
        %v585 = vadd.f32 %v402, %v584
        %v586 = vpop.f32.mrf.mxu0
        %v587 = vpop.f32.mrf.mxu0
        %v588 = vadd.f32 %v407, %v587
        %v589 = vpop.f32.mrf.mxu0
        %590 = vmatprep.mubr.bf16.mxu0 0
        %591 = vmatmul.mubr.bf16.gmra.mxu0 %v515
        %v592 = vpop.f32.mrf.mxu0
        %v593 = vadd.f32 %v412, %v592
        %v594 = vpop.f32.mrf.mxu0
        %v595 = vpop.f32.mrf.mxu0
        %v596 = vadd.f32 %v417, %v595
        %v597 = vpop.f32.mrf.mxu0
        %598 = vmatprep.mubr.bf16.mxu0 0
        %599 = vmatmul.mubr.bf16.gmra.mxu0 %v518
        %v600 = vpop.f32.mrf.mxu0
        %v601 = vadd.f32 %v422, %v600
        %v602 = vpop.f32.mrf.mxu0
        %v603 = vpop.f32.mrf.mxu0
        %v604 = vadd.f32 %v427, %v603
        %v605 = vpop.f32.mrf.mxu0
        %606 = vmatprep.mubr.bf16.mxu0 0
        %607 = vmatmul.mubr.bf16.gmra.mxu0 %v521
        %v608 = vpop.f32.mrf.mxu0
        %v609 = vadd.f32 %v432, %v608
        %v610 = vpop.f32.mrf.mxu0
        %v611 = vpop.f32.mrf.mxu0
        %v612 = vadd.f32 %v437, %v611
        %v613 = vpop.f32.mrf.mxu0
        %614 = vmatprep.mubr.bf16.mxu0 0
        %615 = vmatmul.mubr.bf16.gmra.mxu0 %v524
        %v616 = vpop.f32.mrf.mxu0
        %v617 = vadd.f32 %v442, %v616
        %v618 = vpop.f32.mrf.mxu0
        %v619 = vpop.f32.mrf.mxu0
        %v620 = vadd.f32 %v447, %v619
        %v621 = vpop.f32.mrf.mxu0
        %622 = vdwg.mxu0
        %v623 = vmax.f32 %v561, 0.0
        %v624 = vmax.f32 %v564, 0.0
        %v625 = vmax.f32 %v569, 0.0
        %v626 = vmax.f32 %v572, 0.0
        %v627 = vmax.f32 %v577, 0.0
        %v628 = vmax.f32 %v580, 0.0
        %v629 = vmax.f32 %v585, 0.0
        %v630 = vmax.f32 %v588, 0.0
        %v631 = vmax.f32 %v593, 0.0
        %v632 = vmax.f32 %v596, 0.0
        %v633 = vmax.f32 %v601, 0.0
        %v634 = vmax.f32 %v604, 0.0
        %v635 = vmax.f32 %v609, 0.0
        %v636 = vmax.f32 %v612, 0.0
        %v637 = vmax.f32 %v617, 0.0
        %v638 = vmax.f32 %v620, 0.0
        %v639 = vpack.c.bf16 %v624, %v623
        %v640 = vpack.c.bf16 %v626, %v625
        %v641 = vpack.c.bf16 %v628, %v627
        %v642 = vpack.c.bf16 %v630, %v629
        %v643 = vpack.c.bf16 %v632, %v631
        %v644 = vpack.c.bf16 %v634, %v633
        %v645 = vpack.c.bf16 %v636, %v635
        %v646 = vpack.c.bf16 %v638, %v637
        %v647 = vld [vmem:[%s3] sm:$0xf]
        %v648 = vld [vmem:[%s3 + $0x4] sm:$0xf]
        %v649 = vld [vmem:[%s3 + $0x8] sm:$0xf]
        %v650 = vld [vmem:[%s3 + $0xc] sm:$0xf]
        %v651 = vld [vmem:[%s3 + $0x10] sm:$0xf]
        %v652 = vld [vmem:[%s3 + $0x14] sm:$0xf]
        %v653 = vld [vmem:[%s3 + $0x18] sm:$0xf]
        %v654 = vld [vmem:[%s3 + $0x1c] sm:$0xf]
        %v655 = vld [vmem:[%s3 + $0x20] sm:$0xf]
        %v656 = vld [vmem:[%s3 + $0x24] sm:$0xf]
        %v657 = vld [vmem:[%s3 + $0x28] sm:$0xf]
        %v658 = vld [vmem:[%s3 + $0x2c] sm:$0xf]
        %v659 = vld [vmem:[%s3 + $0x30] sm:$0xf]
        %v660 = vld [vmem:[%s3 + $0x34] sm:$0xf]
        %v661 = vld [vmem:[%s3 + $0x38] sm:$0xf]
        %v662 = vld [vmem:[%s3 + $0x3c] sm:$0xf]
        %v663 = vld [vmem:[%s4] sm:$0xff]
        %v664 = vld [vmem:[%s4 + $0x8] sm:$0xff]
        %v665 = vld [vmem:[%s4 + $0x10] sm:$0xff]
        %v666 = vld [vmem:[%s4 + $0x18] sm:$0xff]
        %v667 = vld [vmem:[%s4 + $0x20] sm:$0xff]
        %v668 = vld [vmem:[%s4 + $0x28] sm:$0xff]
        %v669 = vld [vmem:[%s4 + $0x30] sm:$0xff]
        %v670 = vld [vmem:[%s4 + $0x38] sm:$0xff]
        %v671 = vld [vmem:[%s4 + $0x40] sm:$0xff]
        %v672 = vld [vmem:[%s4 + $0x48] sm:$0xff]
        %v673 = vld [vmem:[%s4 + $0x50] sm:$0xff]
        %v674 = vld [vmem:[%s4 + $0x58] sm:$0xff]
        %v675 = vld [vmem:[%s4 + $0x60] sm:$0xff]
        %v676 = vld [vmem:[%s4 + $0x68] sm:$0xff]
        %v677 = vld [vmem:[%s4 + $0x70] sm:$0xff]
        %v678 = vld [vmem:[%s4 + $0x78] sm:$0xff]
        %680 = vset.pattern.permute.xlu0 0
        %681 = vperm.xlu0 %680, %v663
        %v682 = vpop.permute.xlu0 %681
        %685 = vset.pattern.permute.xlu0 0
        %686 = vperm.xlu0 %685, %v664
        %v687 = vpop.permute.xlu0 %686
        %690 = vset.pattern.permute.xlu0 0
        %691 = vperm.xlu0 %690, %v665
        %v692 = vpop.permute.xlu0 %691
        %695 = vset.pattern.permute.xlu0 0
        %696 = vperm.xlu0 %695, %v666
        %v697 = vpop.permute.xlu0 %696
        %700 = vset.pattern.permute.xlu0 0
        %701 = vperm.xlu0 %700, %v667
        %v702 = vpop.permute.xlu0 %701
        %705 = vset.pattern.permute.xlu0 0
        %706 = vperm.xlu0 %705, %v668
        %v707 = vpop.permute.xlu0 %706
        %710 = vset.pattern.permute.xlu0 0
        %711 = vperm.xlu0 %710, %v669
        %v712 = vpop.permute.xlu0 %711
        %715 = vset.pattern.permute.xlu0 0
        %716 = vperm.xlu0 %715, %v670
        %v717 = vpop.permute.xlu0 %716
        %720 = vset.pattern.permute.xlu0 0
        %721 = vperm.xlu0 %720, %v671
        %v722 = vpop.permute.xlu0 %721
        %725 = vset.pattern.permute.xlu0 0
        %726 = vperm.xlu0 %725, %v672
        %v727 = vpop.permute.xlu0 %726
        %730 = vset.pattern.permute.xlu0 0
        %731 = vperm.xlu0 %730, %v673
        %v732 = vpop.permute.xlu0 %731
        %735 = vset.pattern.permute.xlu0 0
        %736 = vperm.xlu0 %735, %v674
        %v737 = vpop.permute.xlu0 %736
        %740 = vset.pattern.permute.xlu0 0
        %741 = vperm.xlu0 %740, %v675
        %v742 = vpop.permute.xlu0 %741
        %745 = vset.pattern.permute.xlu0 0
        %746 = vperm.xlu0 %745, %v676
        %v747 = vpop.permute.xlu0 %746
        %750 = vset.pattern.permute.xlu0 0
        %751 = vperm.xlu0 %750, %v677
        %v752 = vpop.permute.xlu0 %751
        %755 = vset.pattern.permute.xlu0 0
        %756 = vperm.xlu0 %755, %v678
        %v757 = vpop.permute.xlu0 %756
        %v775 = vunpack.c.l.b16 %v647
        %v776 = vunpack.c.l.b16 %v648
        %v777 = vunpack.c.l.b16 %v649
        %v778 = vunpack.c.l.b16 %v650
        %v779 = vunpack.c.l.b16 %v651
        %v780 = vunpack.c.l.b16 %v652
        %v781 = vunpack.c.l.b16 %v653
        %v782 = vunpack.c.l.b16 %v654
        %v783 = vunpack.c.l.b16 %v655
        %v784 = vunpack.c.l.b16 %v656
        %v785 = vunpack.c.l.b16 %v657
        %v786 = vunpack.c.l.b16 %v658
        %v787 = vunpack.c.l.b16 %v659
        %v788 = vunpack.c.l.b16 %v660
        %v789 = vunpack.c.l.b16 %v661
        %v790 = vunpack.c.l.b16 %v662
        %v791 = vpack.c.b16 %v776, %v775
        %v792 = vpack.c.b16 %v778, %v777
        %v793 = vpack.c.b16 %v780, %v779
        %v794 = vpack.c.b16 %v782, %v781
        %v795 = vpack.c.b16 %v784, %v783
        %v796 = vpack.c.b16 %v786, %v785
        %v797 = vpack.c.b16 %v788, %v787
        %v798 = vpack.c.b16 %v790, %v789
        %807 = vmatprep.subr.bf16.mxu0 0
        %808 = vmatpush1.bf16.msra.mxu0 %v646
        %809 = vmatprep.subr.bf16.mxu0 0
        %810 = vmatpush1.bf16.msra.mxu0 %v645
        %811 = vmatprep.subr.bf16.mxu0 0
        %812 = vmatpush1.bf16.msra.mxu0 %v644
        %813 = vmatprep.subr.bf16.mxu0 0
        %814 = vmatpush1.bf16.msra.mxu0 %v643
        %815 = vmatprep.subr.bf16.mxu0 0
        %816 = vmatpush1.bf16.msra.mxu0 %v642
        %817 = vmatprep.subr.bf16.mxu0 0
        %818 = vmatpush1.bf16.msra.mxu0 %v641
        %819 = vmatprep.subr.bf16.mxu0 0
        %820 = vmatpush1.bf16.msra.mxu0 %v640
        %821 = vmatprep.subr.bf16.mxu0 0
        %822 = vmatpush1.bf16.msra.mxu0 %v639
        %823 = vmatprep.subr.bf16.mxu0 0
        %824 = vmatpush2.bf16.msra.mxu0 0
        %825 = vmatprep.subr.bf16.mxu0 0
        %826 = vmatpush2.bf16.msra.mxu0 0
        %827 = vmatprep.subr.bf16.mxu0 0
        %828 = vmatpush2.bf16.msra.mxu0 0
        %829 = vmatprep.subr.bf16.mxu0 0
        %830 = vmatpush2.bf16.msra.mxu0 0
        %831 = vmatprep.subr.bf16.mxu0 0
        %832 = vmatpush2.bf16.msra.mxu0 0
        %833 = vmatprep.subr.bf16.mxu0 0
        %834 = vmatpush2.bf16.msra.mxu0 0
        %835 = vmatprep.subr.bf16.mxu0 0
        %836 = vmatpush2.bf16.msra.mxu0 0
        %837 = vmatprep.subr.bf16.mxu0 0
        %838 = vmatpush2.bf16.msra.mxu0 0
        %839 = vmatprep.mubr.bf16.mxu0 0
        %840 = vmatmul.mubr.bf16.gmra.mxu0 %v791
        %v841 = vpop.f32.mrf.mxu0
        %v842 = vadd.f32 %v682, %v841
        %v843 = vpop.f32.mrf.mxu0
        %v844 = vpop.f32.mrf.mxu0
        %v845 = vadd.f32 %v687, %v844
        %v846 = vpop.f32.mrf.mxu0
        %847 = vmatprep.mubr.bf16.mxu0 0
        %848 = vmatmul.mubr.bf16.gmra.mxu0 %v792
        %v849 = vpop.f32.mrf.mxu0
        %v850 = vadd.f32 %v692, %v849
        %v851 = vpop.f32.mrf.mxu0
        %v852 = vpop.f32.mrf.mxu0
        %v853 = vadd.f32 %v697, %v852
        %v854 = vpop.f32.mrf.mxu0
        %855 = vmatprep.mubr.bf16.mxu0 0
        %856 = vmatmul.mubr.bf16.gmra.mxu0 %v793
        %v857 = vpop.f32.mrf.mxu0
        %v858 = vadd.f32 %v702, %v857
        %v859 = vpop.f32.mrf.mxu0
        %v860 = vpop.f32.mrf.mxu0
        %v861 = vadd.f32 %v707, %v860
        %v862 = vpop.f32.mrf.mxu0
        %863 = vmatprep.mubr.bf16.mxu0 0
        %864 = vmatmul.mubr.bf16.gmra.mxu0 %v794
        %v865 = vpop.f32.mrf.mxu0
        %v866 = vadd.f32 %v712, %v865
        %v867 = vpop.f32.mrf.mxu0
        %v868 = vpop.f32.mrf.mxu0
        %v869 = vadd.f32 %v717, %v868
        %v870 = vpop.f32.mrf.mxu0
        %871 = vmatprep.mubr.bf16.mxu0 0
        %872 = vmatmul.mubr.bf16.gmra.mxu0 %v795
        %v873 = vpop.f32.mrf.mxu0
        %v874 = vadd.f32 %v722, %v873
        %v875 = vpop.f32.mrf.mxu0
        %v876 = vpop.f32.mrf.mxu0
        %v877 = vadd.f32 %v727, %v876
        %v878 = vpop.f32.mrf.mxu0
        %879 = vmatprep.mubr.bf16.mxu0 0
        %880 = vmatmul.mubr.bf16.gmra.mxu0 %v796
        %v881 = vpop.f32.mrf.mxu0
        %v882 = vadd.f32 %v732, %v881
        %v883 = vpop.f32.mrf.mxu0
        %v884 = vpop.f32.mrf.mxu0
        %v885 = vadd.f32 %v737, %v884
        %v886 = vpop.f32.mrf.mxu0
        %887 = vmatprep.mubr.bf16.mxu0 0
        %888 = vmatmul.mubr.bf16.gmra.mxu0 %v797
        %v889 = vpop.f32.mrf.mxu0
        %v890 = vadd.f32 %v742, %v889
        %v891 = vpop.f32.mrf.mxu0
        %v892 = vpop.f32.mrf.mxu0
        %v893 = vadd.f32 %v747, %v892
        %v894 = vpop.f32.mrf.mxu0
        %895 = vmatprep.mubr.bf16.mxu0 0
        %896 = vmatmul.mubr.bf16.gmra.mxu0 %v798
        %v897 = vpop.f32.mrf.mxu0
        %v898 = vadd.f32 %v752, %v897
        %v899 = vpop.f32.mrf.mxu0
        %v900 = vpop.f32.mrf.mxu0
        %v901 = vadd.f32 %v757, %v900
        %v902 = vpop.f32.mrf.mxu0
        %903 = vdwg.mxu0
        %v904 = vmax.f32 %v842, 0.0
        %v905 = vmax.f32 %v845, 0.0
        %v906 = vmax.f32 %v850, 0.0
        %v907 = vmax.f32 %v853, 0.0
        %v908 = vmax.f32 %v858, 0.0
        %v909 = vmax.f32 %v861, 0.0
        %v910 = vmax.f32 %v866, 0.0
        %v911 = vmax.f32 %v869, 0.0
        %v912 = vmax.f32 %v874, 0.0
        %v913 = vmax.f32 %v877, 0.0
        %v914 = vmax.f32 %v882, 0.0
        %v915 = vmax.f32 %v885, 0.0
        %v916 = vmax.f32 %v890, 0.0
        %v917 = vmax.f32 %v893, 0.0
        %v918 = vmax.f32 %v898, 0.0
        %v919 = vmax.f32 %v901, 0.0
        %v920 = vld [vmem:[%s5] sm:$0xff]
        %v921 = vld [vmem:[%s5 + $0x8] sm:$0xff]
        %v922 = vld [vmem:[%s5 + $0x10] sm:$0xff]
        %v923 = vld [vmem:[%s5 + $0x18] sm:$0xff]
        %v924 = vld [vmem:[%s5 + $0x20] sm:$0xff]
        %v925 = vld [vmem:[%s5 + $0x28] sm:$0xff]
        %v926 = vld [vmem:[%s5 + $0x30] sm:$0xff]
        %v927 = vld [vmem:[%s5 + $0x38] sm:$0xff]
        %v928 = vld [vmem:[%s5 + $0x40] sm:$0xff]
        %v929 = vld [vmem:[%s5 + $0x48] sm:$0xff]
        %v930 = vld [vmem:[%s5 + $0x50] sm:$0xff]
        %v931 = vld [vmem:[%s5 + $0x58] sm:$0xff]
        %v932 = vld [vmem:[%s5 + $0x60] sm:$0xff]
        %v933 = vld [vmem:[%s5 + $0x68] sm:$0xff]
        %v934 = vld [vmem:[%s5 + $0x70] sm:$0xff]
        %v935 = vld [vmem:[%s5 + $0x78] sm:$0xff]
        %937 = vset.pattern.permute.xlu0 0
        %938 = vperm.xlu0 %937, %v920
        %v939 = vpop.permute.xlu0 %938
        %942 = vset.pattern.permute.xlu0 0
        %943 = vperm.xlu0 %942, %v921
        %v944 = vpop.permute.xlu0 %943
        %947 = vset.pattern.permute.xlu0 0
        %948 = vperm.xlu0 %947, %v922
        %v949 = vpop.permute.xlu0 %948
        %952 = vset.pattern.permute.xlu0 0
        %953 = vperm.xlu0 %952, %v923
        %v954 = vpop.permute.xlu0 %953
        %957 = vset.pattern.permute.xlu0 0
        %958 = vperm.xlu0 %957, %v924
        %v959 = vpop.permute.xlu0 %958
        %962 = vset.pattern.permute.xlu0 0
        %963 = vperm.xlu0 %962, %v925
        %v964 = vpop.permute.xlu0 %963
        %967 = vset.pattern.permute.xlu0 0
        %968 = vperm.xlu0 %967, %v926
        %v969 = vpop.permute.xlu0 %968
        %972 = vset.pattern.permute.xlu0 0
        %973 = vperm.xlu0 %972, %v927
        %v974 = vpop.permute.xlu0 %973
        %977 = vset.pattern.permute.xlu0 0
        %978 = vperm.xlu0 %977, %v928
        %v979 = vpop.permute.xlu0 %978
        %982 = vset.pattern.permute.xlu0 0
        %983 = vperm.xlu0 %982, %v929
        %v984 = vpop.permute.xlu0 %983
        %987 = vset.pattern.permute.xlu0 0
        %988 = vperm.xlu0 %987, %v930
        %v989 = vpop.permute.xlu0 %988
        %992 = vset.pattern.permute.xlu0 0
        %993 = vperm.xlu0 %992, %v931
        %v994 = vpop.permute.xlu0 %993
        %997 = vset.pattern.permute.xlu0 0
        %998 = vperm.xlu0 %997, %v932
        %v999 = vpop.permute.xlu0 %998
        %1002 = vset.pattern.permute.xlu0 0
        %1003 = vperm.xlu0 %1002, %v933
        %v1004 = vpop.permute.xlu0 %1003
        %1007 = vset.pattern.permute.xlu0 0
        %1008 = vperm.xlu0 %1007, %v934
        %v1009 = vpop.permute.xlu0 %1008
        %1012 = vset.pattern.permute.xlu0 0
        %1013 = vperm.xlu0 %1012, %v935
        %v1014 = vpop.permute.xlu0 %1013
        %v1016 = vmul.f32 %v939, %v904
        %v1017 = vmul.f32 %v944, %v905
        %v1018 = vmul.f32 %v949, %v906
        %v1019 = vmul.f32 %v954, %v907
        %v1020 = vmul.f32 %v959, %v908
        %v1021 = vmul.f32 %v964, %v909
        %v1022 = vmul.f32 %v969, %v910
        %v1023 = vmul.f32 %v974, %v911
        %v1024 = vmul.f32 %v979, %v912
        %v1025 = vmul.f32 %v984, %v913
        %v1026 = vmul.f32 %v989, %v914
        %v1027 = vmul.f32 %v994, %v915
        %v1028 = vmul.f32 %v999, %v916
        %v1029 = vmul.f32 %v1004, %v917
        %v1030 = vmul.f32 %v1009, %v918
        %v1031 = vmul.f32 %v1014, %v919
        %v1032 = vadd.f32 %v1016, %v1017
        %v1033 = vadd.f32 %v1032, %v1018
        %v1034 = vadd.f32 %v1033, %v1019
        %v1035 = vadd.f32 %v1034, %v1020
        %v1036 = vadd.f32 %v1035, %v1021
        %v1037 = vadd.f32 %v1036, %v1022
        %v1038 = vadd.f32 %v1037, %v1023
        %v1039 = vadd.f32 %v1038, %v1024
        %v1040 = vadd.f32 %v1039, %v1025
        %v1041 = vadd.f32 %v1040, %v1026
        %v1042 = vadd.f32 %v1041, %v1027
        %v1043 = vadd.f32 %v1042, %v1028
        %v1044 = vadd.f32 %v1043, %v1029
        %v1045 = vadd.f32 %v1044, %v1030
        %v1046 = vadd.f32 %v1045, %v1031
        %v1047 = vrot.slane %v1046, 4
        %v1048 = vadd.f32 %v1046, %v1047
        %v1049 = vrot.slane %v1048, 2
        %v1050 = vadd.f32 %v1048, %v1049
        %v1051 = vrot.slane %v1050, 1
        %v1052 = vadd.f32 %v1050, %v1051
        %s1053 = sld [smem:[#allocation2]]
        %v1054 = vstv %s1053
        %v1055 = vadd.f32 %v1052, %v1054
        %1056 = vst [vmem:[%s331] sm:$0x1] %v1055
        %s1057 = sand.u32 %s182, 1
        %s1058 = scalar_lea.sflag [#allocation5], %s1057
        %s1059 = sand.u32 %s182, 1
        %s1060 = scalar_lea.vmem [#allocation4], %s1059
        // Predicated region
        $region90: #{tpu_custom_call.1} parent=84 // pred_check
          %p1061 = pneg %p192
        $region91: #{tpu_custom_call.1} parent=84 // pred_check_branch
          %1063 = sbr.rel (%p1061) target = $region93
        $region92: #{tpu_custom_call.1} parent=84 // pred_region
          %s1065 = ssub.s32 16, 16
          %1066 = vsyncadd %s1058, %s1065
          %s1067 = smul.addr %s22, 16
          %s1068 = scalar_lea.hbm %s7, %s1067
          %s1070 = sshll.u32 %s1060, 4
          %s1071 = int_to_ptr.vmem [resolvable:$true] %s1070
          %1073 = dma.vmem_to_hbm [thread:$0]  %s1071, 16, %s1068, %s1058
        $region93: #{tpu_custom_call.1} parent=84 // pred_fallthru
          _
      $region85: #{tpu_custom_call.1} parent=5 // pred_fallthru
        _
      %p1074 = scmp.le.s32.totalorder 2, %s17
      // Predicated region
      $region94: #{tpu_custom_call.1} parent=5 // pred_check
        %p1075 = pneg %p1074
      $region95: #{tpu_custom_call.1} parent=5 // pred_check_branch
        %1077 = sbr.rel (%p1075) target = $region97
      $region96: #{tpu_custom_call.1} parent=5 // pred_region
        %s1078 = ssub.s32 %s17, 2
        // Predicated region
        $region98: #{tpu_custom_call.1} parent=96 // pred_check
          %p1079 = pneg %p198
        $region99: #{tpu_custom_call.1} parent=96 // pred_check_branch
          %1081 = sbr.rel (%p1079) target = $region101
        $region100: #{tpu_custom_call.1} parent=96 // pred_region
          %s1082 = sand.u32 %s183, 1
          %s1083 = scalar_lea.sflag [#allocation5], %s1082
          %s1084 = sand.u32 %s183, 1
          %s1085 = scalar_lea.vmem [#allocation4], %s1084
          %1086 = dma.done %s1083, 16
        $region101: #{tpu_custom_call.1} parent=96 // pred_fallthru
          _
      $region97: #{tpu_custom_call.1} parent=5 // pred_fallthru
        _
    $region6: #{tpu_custom_call.1} parent=1 // loop_footer
      %s21 = sadd.s32 1, %s17
    $region7: #{tpu_custom_call.1} parent=1 // loop_footer_branch
      %16 = sbr.rel target = $region3
    $region8: #{tpu_custom_call.1} parent=1 // loop_exit
      _
    %1087 = vsyncpa [#allocation5], 1
    %s1088 = scalar_lea.sflag [#allocation5], 1
    %1089 = vsyncpa %s1088, 1

</llo_original>
